<compile_context>
chip_gen: v5e
topology: v5e:2x2
jax: 0.10.0
libtpu: 0.0.40
codegen_flags: <defaults>
</compile_context>

<pallas_src>
import jax
import jax.numpy as jnp
from jax.experimental import pallas as pl
from jax.experimental.pallas import tpu as pltpu

INPUT_SIZE = 32
OUTPUT_SIZE = 16

_PACK = 8                 # batch rows folded into lanes (8 * 32 = 256 input lanes)
_TILE_ROWS_PACKED = 2048  # packed-row tile -> 16384 original batch rows / grid step
_TILE_B_PLAIN = 4096      # plain-path batch tile (only used when B % 8 != 0)
_SMALL_B = 1024           # at/below this: single un-gridded call

_COMPILER_PARAMS = pltpu.CompilerParams(
    dimension_semantics=("parallel",),      # v7x: shard batch tiles across 2 TCs
    vmem_limit_bytes=32 * 1024 * 1024,      # keep v5e (16 MiB default) happy too
)


def _linear_kernel(x_ref, w_ref, b_ref, o_ref):
    # One MXU matmul (f32 accumulate) + bias broadcast over rows.
    o_ref[...] = (
        jnp.dot(x_ref[...], w_ref[...], preferred_element_type=jnp.float32)
        + b_ref[...]
    )


def _cost(rows, k, n):
    return pl.CostEstimate(
        flops=2 * rows * k * n,
        transcendentals=0,
        bytes_accessed=4 * (rows * k + k * n + n + rows * n),
    )


def _call_single(x, w2d, b2d):
    """Small batch: single un-gridded call, everything resident in VMEM."""
    rows, k = x.shape
    n = w2d.shape[1]
    return pl.pallas_call(
        _linear_kernel,
        out_shape=jax.ShapeDtypeStruct((rows, n), jnp.float32),
        in_specs=[
            pl.BlockSpec(memory_space=pltpu.MemorySpace.VMEM),
            pl.BlockSpec(memory_space=pltpu.MemorySpace.VMEM),
            pl.BlockSpec(memory_space=pltpu.MemorySpace.VMEM),
        ],
        out_specs=pl.BlockSpec(memory_space=pltpu.MemorySpace.VMEM),
        cost_estimate=_cost(rows, k, n),
    )(x, w2d, b2d)


def _call_gridded(x, w2d, b2d, tile_rows):
    """Row-tiled path; W/bias stay resident (same block every step).  The last
    block may be partial -- Pallas pads the read and masks the write."""
    rows, k = x.shape
    n = w2d.shape[1]
    return pl.pallas_call(
        _linear_kernel,
        out_shape=jax.ShapeDtypeStruct((rows, n), jnp.float32),
        grid=(pl.cdiv(rows, tile_rows),),
        in_specs=[
            pl.BlockSpec((tile_rows, k), lambda i: (i, 0)),
            pl.BlockSpec((k, n), lambda i: (0, 0)),
            pl.BlockSpec((1, n), lambda i: (0, 0)),
        ],
        out_specs=pl.BlockSpec((tile_rows, n), lambda i: (i, 0)),
        compiler_params=_COMPILER_PARAMS,
        cost_estimate=_cost(rows, k, n),
    )(x, w2d, b2d)


def linear_forward(x, w, b):
    """y = x @ w + b ; w is [IN, OUT] (PyTorch weight already transposed)."""
    x = jnp.asarray(x).astype(jnp.float32)   # mirrors torch.tensor(xb, dtype=torch.float)
    B, IN = x.shape
    OUT = w.shape[1]
    w = jnp.asarray(w).astype(jnp.float32)
    b2d = jnp.asarray(b).astype(jnp.float32).reshape(1, OUT)

    if B <= _SMALL_B:
        return _call_single(x, w, b2d)

    if B % _PACK == 0:
        # Lane-packed path: fold _PACK consecutive batch rows into the lane dim.
        # x: (B, IN) -> (B/PACK, PACK*IN); W becomes block-diagonal (PACK*IN, PACK*OUT);
        # the packed output (B/PACK, PACK*OUT) reshapes back to (B, OUT) for free.
        packed_rows = B // _PACK
        x_packed = x.reshape(packed_rows, _PACK * IN)
        eye = jnp.eye(_PACK, dtype=jnp.float32)
        w_bd = jnp.einsum("pq,kn->pkqn", eye, w).reshape(_PACK * IN, _PACK * OUT)
        b_bd = jnp.tile(b2d, (1, _PACK))
        tile_rows = _TILE_ROWS_PACKED if packed_rows > _TILE_ROWS_PACKED else packed_rows
        y_packed = _call_gridded(x_packed, w_bd, b_bd, tile_rows)
        return y_packed.reshape(B, OUT)

    # Fallback (B not a multiple of 8): plain row tiling, masked partial last block.
    tile_b = _TILE_B_PLAIN if B > _TILE_B_PLAIN else B
    return _call_gridded(x, w, b2d, tile_b)


if __name__ == "__main__":
    key = jax.random.PRNGKey(0)
    kx, kw, kb, kx2, kx3 = jax.random.split(key, 5)

    # Deterministic parameters (PyTorch nn.Linear-style uniform bound).
    bound = 1.0 / jnp.sqrt(jnp.float32(INPUT_SIZE))
    w = jax.random.uniform(kw, (INPUT_SIZE, OUTPUT_SIZE),
                           minval=-bound, maxval=bound, dtype=jnp.float32)
    b = jax.random.uniform(kb, (OUTPUT_SIZE,),
                           minval=-bound, maxval=bound, dtype=jnp.float32)

    # 1) Small-batch path (single un-gridded call).
    batch = 8
    x = jax.random.normal(kx, (batch, INPUT_SIZE), dtype=jnp.float32)
    y = linear_forward(x, w, b)
    jax.block_until_ready(y)
    y_ref = x @ w + b
    assert y.shape == (batch, OUTPUT_SIZE)
    assert jnp.allclose(y, y_ref, atol=1e-4, rtol=1e-4), "small-batch mismatch"

    # 2) Large-batch lane-packed path (B % 8 == 0, gridded, weights resident).
    big_batch = 32768
    x_big = jax.random.normal(kx2, (big_batch, INPUT_SIZE), dtype=jnp.float32)
    y_big = linear_forward(x_big, w, b)
    jax.block_until_ready(y_big)
    y_big_ref = x_big @ w + b
    assert y_big.shape == (big_batch, OUTPUT_SIZE)
    assert jnp.allclose(y_big, y_big_ref, atol=1e-4, rtol=1e-4), "packed-path mismatch"

    # 3) Ragged batch (B % 8 != 0): plain gridded path, masked partial last block.
    ragged_batch = 4100
    x_rag = jax.random.normal(kx3, (ragged_batch, INPUT_SIZE), dtype=jnp.float32)
    y_rag = linear_forward(x_rag, w, b)
    jax.block_until_ready(y_rag)
    y_rag_ref = x_rag @ w + b
    assert y_rag.shape == (ragged_batch, OUTPUT_SIZE)
    assert jnp.allclose(y_rag, y_rag_ref, atol=1e-4, rtol=1e-4), "ragged-path mismatch"

    print("KERNEL_OK")
</pallas_src>

<mosaic_0001>
module attributes {stable_mosaic.version = 11 : i64} {
  func.func @_linear_kernel(%arg0: memref<8x32xf32, #tpu.memory_space<vmem>>, %arg1: memref<32x16xf32, #tpu.memory_space<vmem>>, %arg2: memref<1x16xf32, #tpu.memory_space<vmem>>, %arg3: memref<8x16xf32, #tpu.memory_space<vmem>>) attributes {dimension_semantics = [], scalar_prefetch = 0 : i64, scratch_operands = 0 : i64, tpu.core_type = #tpu.core_type<tc>} {
    %c0 = arith.constant 0 : index
    %c0_0 = arith.constant 0 : index
    %0 = vector.load %arg0[%c0, %c0_0] : memref<8x32xf32, #tpu.memory_space<vmem>>, vector<8x32xf32>
    %c0_1 = arith.constant 0 : index
    %c0_2 = arith.constant 0 : index
    %1 = vector.load %arg1[%c0_1, %c0_2] : memref<32x16xf32, #tpu.memory_space<vmem>>, vector<32x16xf32>
    %cst = arith.constant dense<0.000000e+00> : vector<8x16xf32>
    %2 = tpu.matmul %0, %1, %cst {dimension_numbers = #tpu.dot_dimension_numbers<[1], [0], [0], [1], [0, 0, 1, 1], [], []>} : vector<8x32xf32>, vector<32x16xf32>, vector<8x16xf32> -> vector<8x16xf32>
    %c0_3 = arith.constant 0 : index
    %c0_4 = arith.constant 0 : index
    %3 = vector.load %arg2[%c0_3, %c0_4] : memref<1x16xf32, #tpu.memory_space<vmem>>, vector<1x16xf32>
    %4 = vector.broadcast %3 : vector<1x16xf32> to vector<8x16xf32>
    %5 = arith.addf %2, %4 : vector<8x16xf32>
    %c0_5 = arith.constant 0 : index
    %c0_6 = arith.constant 0 : index
    %6 = vector.load %arg3[%c0_5, %c0_6] : memref<8x16xf32, #tpu.memory_space<vmem>>, vector<8x16xf32>
    tpu.vector_store %arg3[%c0_5, %c0_6], %5 {strides = array<i32>} : memref<8x16xf32, #tpu.memory_space<vmem>>, vector<8x16xf32>,
    return
  }
}

</mosaic_0001>

<llo_original>
// kernel: tpu_custom_call.1
$region0: #{tpu_custom_call.1}
  #allocation0 [shape = 'u32[]', space=smem, size = 0x4, offset = 0x4, fixed_abs, tag = 'smem constant byte address 0x4 - core index']
  #allocation1 [shape = 'u32[72,128]{1,0:T(1,128)}', space=vmem, size = 0x9000, scoped, tag = 'internal scratch']
  %s0 = inlined_call_operand.vmem [shape: f32[8,32], index: 0, kind: input, shape index: {}]
  %s1 = inlined_call_operand.vmem [shape: f32[32,16], index: 1, kind: input, shape index: {}]
  %s2 = inlined_call_operand.vmem [shape: f32[1,16], index: 2, kind: input, shape index: {}]
  %s3 = inlined_call_operand.hbm [shape: f32[8,16], index: 3, kind: output, shape index: {}]
  %s4 = sld [smem:[#allocation0]]
  $region22: #{tpu_custom_call.1} parent=0
    _
  %s6 = ssub.s32 1, %s4
  %s7 = scalar_select 0, %s6, %s4
  $region1: #{tpu_custom_call.1} parent=0
    #allocation2 [shape = 'u8[4096]{0}', space=vmem, size = 0x1000, scoped, tag = 'output window, operand 0, single buffered']
    #allocation3 [shape = 's32[1]{0}', space=sflag, size = 0x4, scoped, tag = 'scoped memory for tpu_custom_call.1']
    %8 = vsyncpa [#allocation3], 0
    // Predicated region
    $region2: #{tpu_custom_call.1} parent=1 // pred_check
      _
    $region3: #{tpu_custom_call.1} parent=1 // pred_check_branch
      %10 = sbr.rel (0) target = $region5
    $region4: #{tpu_custom_call.1} parent=1 // pred_region
      _
    $region5: #{tpu_custom_call.1} parent=1 // pred_fallthru
      _
    // Predicated region
    $region6: #{tpu_custom_call.1} parent=1 // pred_check
      _
    $region7: #{tpu_custom_call.1} parent=1 // pred_check_branch
      %12 = sbr.rel (0) target = $region9
    $region8: #{tpu_custom_call.1} parent=1 // pred_region
      _
    $region9: #{tpu_custom_call.1} parent=1 // pred_fallthru
      _
    // Predicated region
    $region10: #{tpu_custom_call.1} parent=1 // pred_check
      _
    $region11: #{tpu_custom_call.1} parent=1 // pred_check_branch
      %14 = sbr.rel (0) target = $region13
    $region12: #{tpu_custom_call.1} parent=1 // pred_region
      _
    $region13: #{tpu_custom_call.1} parent=1 // pred_fallthru
      _
    %v15 = vld [vmem:[%s0] sm:$0xff]
    %v16 = vld [vmem:[%s1] sm:$0xff]
    %v17 = vld [vmem:[%s1 + $0x8] sm:$0xff]
    %v18 = vld [vmem:[%s1 + $0x10] sm:$0xff]
    %v19 = vld [vmem:[%s1 + $0x18] sm:$0xff]
    %v20 = vld [vmem:[%s2] sm:$0x1]
    %v22 = vperm.slane %v20, 0
    %vm24 = vcmask 261120
    %v26 = vsel %vm24, %v15, 0
    %28 = vmatpush.msra.mxu0 0.0
    %29 = vmatpush.msra.mxu0 0.0
    %30 = vmatpush.msra.mxu0 0.0
    %31 = vmatpush.msra.mxu0 0.0
    %32 = vmatpush.msra.mxu0 0.0
    %33 = vmatpush.msra.mxu0 0.0
    %34 = vmatpush.msra.mxu0 0.0
    %35 = vmatpush.msra.mxu0 0.0
    %36 = vmatpush.msra.mxu0 0.0
    %37 = vmatpush.msra.mxu0 0.0
    %38 = vmatpush.msra.mxu0 0.0
    %39 = vmatpush.msra.mxu0 0.0
    %40 = vmatpush.msra.mxu0 %v19
    %41 = vmatpush.msra.mxu0 %v18
    %42 = vmatpush.msra.mxu0 %v17
    %43 = vmatpush.msra.mxu0 %v16
    %44 = vmatmul.f32.gmra.mxu0 %v26
    %v45 = vpop.f32.mrf.mxu0
    %v46 = vadd.f32 %v22, %v45
    %47 = vdwg.mxu0
    %vm48 = vcmask 130048
    %49 = vst.msk [vmem:[#allocation2] sm:$0xff] %vm48, %v46
    // Predicated region
    $region14: #{tpu_custom_call.1} parent=1 // pred_check
      _
    $region15: #{tpu_custom_call.1} parent=1 // pred_check_branch
      %51 = sbr.rel (0) target = $region17
    $region16: #{tpu_custom_call.1} parent=1 // pred_region
      %53 = vsyncadd [#allocation3], 0
      %s55 = sshll.u32 [#allocation2], 4
      %s56 = int_to_ptr.vmem [resolvable:$true] %s55
      %s57 = sshll.u32 %s3, 4
      %s58 = int_to_ptr.hbm [resolvable:$true] %s57
      %60 = dma.vmem_to_hbm [thread:$0]  %s56, 128, %s58, [#allocation3]
    $region17: #{tpu_custom_call.1} parent=1 // pred_fallthru
      _
    // Predicated region
    $region18: #{tpu_custom_call.1} parent=1 // pred_check
      _
    $region19: #{tpu_custom_call.1} parent=1 // pred_check_branch
      %62 = sbr.rel (0) target = $region21
    $region20: #{tpu_custom_call.1} parent=1 // pred_region
      %64 = dma.done [#allocation3], 128
    $region21: #{tpu_custom_call.1} parent=1 // pred_fallthru
      _
    %65 = vsyncpa [#allocation3], 1

</llo_original>
